<compile_context>
chip_gen: v5e
topology: v5e:2x2
jax: 0.10.0
libtpu: 0.0.40
codegen_flags: <defaults>
</compile_context>

<pallas_src>
import jax
import jax.numpy as jnp
from jax.experimental import pallas as pl
from jax.experimental.pallas import tpu as pltpu

PACK = 4  # rows packed per 128-lane vreg row (4 * e_word(32) = 128 lanes)


# --------------------------------------------------------------------------
# Kernel
# --------------------------------------------------------------------------
def highway_kernel(x_ref, w_ref, b_ref, o_ref):
    ep = x_ref.shape[-1]  # packed width = PACK * E (= 128)

    xv = x_ref[...]                      # single VMEM load, reused below
    x_f32 = xv.astype(jnp.float32)

    # One fused MXU matmul: (rows, 128) @ (128, 256) -> (rows, 256), f32 acc.
    h = jnp.dot(
        xv.astype(w_ref.dtype),
        w_ref[...],
        preferred_element_type=jnp.float32,
    ) + b_ref[...]

    proj = jnp.maximum(h[:, :ep], 0.0)   # relu branch (VPU), 128-lane aligned
    gate = jax.nn.sigmoid(h[:, ep:])     # gate branch (EUP transcendental)

    # Highway combine: x + gate * (proj - x)  ==  gate*proj + (1-gate)*x
    o_ref[...] = (x_f32 + gate * (proj - x_f32)).astype(o_ref.dtype)


# --------------------------------------------------------------------------
# One-time parameter prep (hoisted out of the hot path)
# --------------------------------------------------------------------------
def prepare_highway_params(w_proj, b_proj, w_gate, b_gate,
                           *, matmul_dtype=jnp.float32):
    """Build the lane-packed fused parameters.

    w_*: (E, E) in PyTorch nn.Linear layout (out, in).  b_*: (E,).
    Returns:
      w_fused: (PACK*E, 2*PACK*E) = [blkdiag(W_proj.T x PACK) | blkdiag(W_gate.T x PACK)]
      b_fused: (1, 2*PACK*E)      = [tile(b_proj, PACK) | tile(b_gate, PACK)], f32
    """
    wp_t = jnp.asarray(w_proj, dtype=jnp.float32).T   # (E, E)
    wg_t = jnp.asarray(w_gate, dtype=jnp.float32).T
    eye = jnp.eye(PACK, dtype=jnp.float32)
    wp_block = jnp.kron(eye, wp_t)                    # (PACK*E, PACK*E), block-diag
    wg_block = jnp.kron(eye, wg_t)
    w_fused = jnp.concatenate([wp_block, wg_block], axis=1).astype(matmul_dtype)

    bp = jnp.tile(jnp.asarray(b_proj, dtype=jnp.float32), PACK)
    bg = jnp.tile(jnp.asarray(b_gate, dtype=jnp.float32), PACK)
    b_fused = jnp.concatenate([bp, bg]).reshape(1, -1)
    return w_fused, b_fused


# --------------------------------------------------------------------------
# Tile-size selection (VMEM- and megacore-aware)
# --------------------------------------------------------------------------
def _tpu_vmem_bytes():
    try:
        return int(pltpu.get_tpu_info().vmem_capacity_bytes)
    except Exception:
        return 64 * 1024 * 1024  # conservative: v7x physical VMEM


def _default_max_block_rows(vmem_bytes):
    # ~5 KiB / packed row: f32 x/out double buffers + f32 temporaries
    # (h, proj, gate, x_f32).  Use ~1/3 of physical VMEM for the streamed tiles.
    rows = (vmem_bytes // 3) // (5 * 1024)
    rows = (rows // 8) * 8
    return max(256, min(8192, rows))


def _round_up8(n):
    return ((n + 7) // 8) * 8


def _pick_block_rows(rows, requested, vmem_bytes):
    max_rows = requested if requested is not None else _default_max_block_rows(vmem_bytes)
    max_rows = max(8, (max_rows // 8) * 8)
    if rows > max_rows:
        return max_rows
    # Fits in one tile: still split into >= 2 grid steps (when there is enough
    # work) so dimension_semantics=("parallel",) can shard across both v7x TCs.
    if rows >= 16:
        half = _round_up8(pl.cdiv(rows, 2))
        if half < rows:
            return half
    return rows  # single tile == full array dim: always a legal block shape


# --------------------------------------------------------------------------
# Wrapper
# --------------------------------------------------------------------------
def highway(x, w_fused, b_fused, *, block_rows=None):
    """x: (B, E). w_fused: (PACK*E, 2*PACK*E). b_fused: (1, 2*PACK*E).

    Returns (B, E) in x.dtype.
    """
    B, E = x.shape
    EP = PACK * E
    assert w_fused.shape == (EP, 2 * EP), w_fused.shape
    assert b_fused.shape == (1, 2 * EP), b_fused.shape

    # Pad the batch to a multiple of PACK, then lane-pack 4 rows per 128 lanes.
    B_pad = ((B + PACK - 1) // PACK) * PACK
    if B_pad != B:
        x = jnp.pad(x, ((0, B_pad - B), (0, 0)))
    rows = B_pad // PACK
    x_packed = x.reshape(rows, EP)

    vmem_bytes = _tpu_vmem_bytes()
    brows = _pick_block_rows(rows, block_rows, vmem_bytes)
    grid = (pl.cdiv(rows, brows),)

    itemsize = jnp.dtype(x.dtype).itemsize
    cost = pl.CostEstimate(
        flops=2 * rows * EP * (2 * EP) + 6 * rows * EP,
        transcendentals=rows * EP,  # sigmoid
        bytes_accessed=(rows * EP * itemsize                                   # x
                        + w_fused.size * jnp.dtype(w_fused.dtype).itemsize     # W
                        + b_fused.size * 4                                     # b
                        + rows * EP * itemsize),                               # out
    )

    out_packed = pl.pallas_call(
        highway_kernel,
        out_shape=jax.ShapeDtypeStruct((rows, EP), x.dtype),
        grid=grid,
        in_specs=[
            pl.BlockSpec((brows, EP), lambda i: (i, 0)),    # packed x (pipelined)
            pl.BlockSpec((EP, 2 * EP), lambda i: (0, 0)),   # fused weight (resident)
            pl.BlockSpec((1, 2 * EP), lambda i: (0, 0)),    # fused bias (resident)
        ],
        out_specs=pl.BlockSpec((brows, EP), lambda i: (i, 0)),
        compiler_params=pltpu.CompilerParams(
            dimension_semantics=("parallel",),     # megacore-shard batch on v7x
            vmem_limit_bytes=(vmem_bytes * 3) // 4,
        ),
        cost_estimate=cost,
    )(x_packed, w_fused, b_fused)

    out = out_packed.reshape(B_pad, E)
    if B_pad != B:
        out = out[:B]
    return out


# --------------------------------------------------------------------------
# Pure-JAX reference
# --------------------------------------------------------------------------
def highway_ref(x, w_proj, b_proj, w_gate, b_gate):
    proj = jax.nn.relu(jnp.dot(x, w_proj.T, preferred_element_type=jnp.float32)
                       + b_proj)
    gate = jax.nn.sigmoid(jnp.dot(x, w_gate.T, preferred_element_type=jnp.float32)
                          + b_gate)
    return gate * proj + (1.0 - gate) * x


if __name__ == "__main__":
    e_word = 32
    batch = 10  # deliberately not a multiple of PACK to exercise the pad path

    key = jax.random.PRNGKey(0)
    kx, kwp, kbp, kwg, kbg = jax.random.split(key, 5)

    x = jax.random.normal(kx, (batch, e_word), dtype=jnp.float32)
    # Deterministic synthetic parameters (nn.Linear(e_word, e_word) shapes).
    bound = 1.0 / (e_word ** 0.5)
    w_proj = jax.random.uniform(kwp, (e_word, e_word), jnp.float32, -bound, bound)
    b_proj = jax.random.uniform(kbp, (e_word,), jnp.float32, -bound, bound)
    w_gate = jax.random.uniform(kwg, (e_word, e_word), jnp.float32, -bound, bound)
    b_gate = jax.random.uniform(kbg, (e_word,), jnp.float32, -bound, bound)

    # One-time param prep (transpose + block-diag packing + bias tiling).
    w_fused, b_fused = prepare_highway_params(w_proj, b_proj, w_gate, b_gate)

    out = jax.block_until_ready(highway(x, w_fused, b_fused))

    ref = highway_ref(x, w_proj, b_proj, w_gate, b_gate)

    assert out.shape == (batch, e_word)
    assert jnp.allclose(out, ref, atol=1e-4, rtol=1e-4), "mismatch vs f32 reference"

    print("KERNEL_OK")
</pallas_src>

<mosaic_0001>
module attributes {stable_mosaic.version = 11 : i64} {
  func.func @highway_kernel(%arg0: i32, %arg1: memref<3x128xf32, #tpu.memory_space<vmem>>, %arg2: memref<128x256xf32, #tpu.memory_space<vmem>>, %arg3: memref<1x256xf32, #tpu.memory_space<vmem>>, %arg4: memref<3x128xf32, #tpu.memory_space<vmem>>) attributes {dimension_semantics = [#tpu.dimension_semantics<parallel>], iteration_bounds = array<i64: 1>, scalar_prefetch = 0 : i64, scratch_operands = 0 : i64, tpu.core_type = #tpu.core_type<tc>, window_params = [{transform_indices = @transform_0, window_bounds = array<i64: 3, 128>}, {pipeline_mode = #tpu.pipeline_mode<synchronous>, transform_indices = @transform_1, window_bounds = array<i64: 128, 256>}, {pipeline_mode = #tpu.pipeline_mode<synchronous>, transform_indices = @transform_2, window_bounds = array<i64: 1, 256>}, {transform_indices = @transform_3, window_bounds = array<i64: 3, 128>}]} {
    %c0 = arith.constant 0 : index
    %c0_0 = arith.constant 0 : index
    %0 = vector.load %arg1[%c0, %c0_0] : memref<3x128xf32, #tpu.memory_space<vmem>>, vector<3x128xf32>
    %c0_1 = arith.constant 0 : index
    %c0_2 = arith.constant 0 : index
    %1 = vector.load %arg2[%c0_1, %c0_2] : memref<128x256xf32, #tpu.memory_space<vmem>>, vector<128x256xf32>
    %cst = arith.constant dense<0.000000e+00> : vector<3x256xf32>
    %2 = tpu.matmul %0, %1, %cst {dimension_numbers = #tpu.dot_dimension_numbers<[1], [0], [0], [1], [0, 0, 1, 1], [], []>} : vector<3x128xf32>, vector<128x256xf32>, vector<3x256xf32> -> vector<3x256xf32>
    %c0_3 = arith.constant 0 : index
    %c0_4 = arith.constant 0 : index
    %3 = vector.load %arg3[%c0_3, %c0_4] : memref<1x256xf32, #tpu.memory_space<vmem>>, vector<1x256xf32>
    %4 = vector.broadcast %3 : vector<1x256xf32> to vector<3x256xf32>
    %5 = arith.addf %2, %4 : vector<3x256xf32>
    %6 = vector.extract_strided_slice %5 {offsets = [0, 0], sizes = [3, 128], strides = [1, 1]} : vector<3x256xf32> to vector<3x128xf32>
    %cst_5 = arith.constant 0.000000e+00 : f32
    %7 = vector.broadcast %cst_5 : f32 to vector<3x128xf32>
    %8 = arith.maximumf %6, %7 : vector<3x128xf32>
    %9 = vector.extract_strided_slice %5 {offsets = [0, 128], sizes = [3, 128], strides = [1, 1]} : vector<3x256xf32> to vector<3x128xf32>
    %10 = arith.negf %9 : vector<3x128xf32>
    %11 = math.exp %10 : vector<3x128xf32>
    %cst_6 = arith.constant 1.000000e+00 : f32
    %12 = vector.broadcast %cst_6 : f32 to vector<3x128xf32>
    %13 = arith.addf %12, %11 : vector<3x128xf32>
    %14 = arith.divf %12, %13 : vector<3x128xf32>
    %15 = arith.subf %8, %0 : vector<3x128xf32>
    %16 = arith.mulf %14, %15 : vector<3x128xf32>
    %17 = arith.addf %0, %16 : vector<3x128xf32>
    %c0_7 = arith.constant 0 : index
    %c0_8 = arith.constant 0 : index
    %18 = vector.load %arg4[%c0_7, %c0_8] : memref<3x128xf32, #tpu.memory_space<vmem>>, vector<3x128xf32>
    tpu.vector_store %arg4[%c0_7, %c0_8], %17 {strides = array<i32>} : memref<3x128xf32, #tpu.memory_space<vmem>>, vector<3x128xf32>,
    return
  }
  func.func @transform_0(%arg0: i32) -> (i32, i32) {
    %c0_i32 = arith.constant 0 : i32
    %c0_i32_0 = arith.constant 0 : i32
    return %arg0, %c0_i32 : i32, i32
  }
  func.func @transform_1(%arg0: i32) -> (i32, i32) {
    %c0_i32 = arith.constant 0 : i32
    %c0_i32_0 = arith.constant 0 : i32
    %c0_i32_1 = arith.constant 0 : i32
    return %c0_i32, %c0_i32_0 : i32, i32
  }
  func.func @transform_2(%arg0: i32) -> (i32, i32) {
    %c0_i32 = arith.constant 0 : i32
    %c0_i32_0 = arith.constant 0 : i32
    %c0_i32_1 = arith.constant 0 : i32
    return %c0_i32, %c0_i32_0 : i32, i32
  }
  func.func @transform_3(%arg0: i32) -> (i32, i32) {
    %c0_i32 = arith.constant 0 : i32
    %c0_i32_0 = arith.constant 0 : i32
    return %arg0, %c0_i32 : i32, i32
  }
}

</mosaic_0001>

<llo_original>
// kernel: tpu_custom_call.1
$region0: #{tpu_custom_call.1}
  #allocation0 [shape = 'u32[]', space=smem, size = 0x4, offset = 0x4, fixed_abs, tag = 'smem constant byte address 0x4 - core index']
  #allocation1 [shape = 'u32[72,128]{1,0:T(1,128)}', space=vmem, size = 0x9000, scoped, tag = 'internal scratch']
  %s0 = inlined_call_operand.hbm [shape: f32[3,128], index: 0, kind: input, shape index: {}]
  %s1 = inlined_call_operand.hbm [shape: f32[128,256], index: 1, kind: input, shape index: {}]
  %s2 = inlined_call_operand.hbm [shape: f32[1,256], index: 2, kind: input, shape index: {}]
  %s3 = inlined_call_operand.hbm [shape: f32[3,128], index: 3, kind: output, shape index: {}]
  %s4 = sld [smem:[#allocation0]]
  $region34: #{tpu_custom_call.1} parent=0
    _
  %s6 = ssub.s32 1, %s4
  %s7 = scalar_select 0, %s6, %s4
  $region1: #{tpu_custom_call.1} parent=0
    #allocation2 [shape = 'u8[2048]{0}', space=vmem, size = 0x800, scoped, tag = 'input window, operand 0, single buffered']
    #allocation3 [shape = 's32[1]{0}', space=sflag, size = 0x4, scoped, tag = 'scoped memory for tpu_custom_call.1']
    #allocation4 [shape = 's32[1]{0}', space=sflag, size = 0x4, scoped, tag = 'scoped memory for tpu_custom_call.1']
    #allocation5 [shape = 'u8[131072]{0}', space=vmem, size = 0x20000, scoped, tag = 'input window, operand 1, single buffered']
    #allocation6 [shape = 's32[1]{0}', space=sflag, size = 0x4, scoped, tag = 'scoped memory for tpu_custom_call.1']
    #allocation7 [shape = 'u8[1024]{0}', space=vmem, size = 0x400, scoped, tag = 'input window, operand 2, single buffered']
    #allocation8 [shape = 'u8[2048]{0}', space=vmem, size = 0x800, scoped, tag = 'output window, operand 0, single buffered']
    %8 = vsyncpa [#allocation3], 0
    %9 = vsyncpa [#allocation6], 0
    %10 = vsyncpa [#allocation4], 0
    // Predicated region
    $region2: #{tpu_custom_call.1} parent=1 // pred_check
      _
    $region3: #{tpu_custom_call.1} parent=1 // pred_check_branch
      %12 = sbr.rel (0) target = $region5
    $region4: #{tpu_custom_call.1} parent=1 // pred_region
      %14 = vsyncadd [#allocation3], 0
      %s16 = sshll.u32 %s0, 4
      %s17 = int_to_ptr.hbm [resolvable:$true] %s16
      %s18 = sshll.u32 [#allocation2], 4
      %s19 = int_to_ptr.vmem [resolvable:$true] %s18
      %21 = dma.hbm_to_vmem [thread:$0]  %s17, 64, %s19, [#allocation3]
    $region5: #{tpu_custom_call.1} parent=1 // pred_fallthru
      _
    // Predicated region
    $region6: #{tpu_custom_call.1} parent=1 // pred_check
      _
    $region7: #{tpu_custom_call.1} parent=1 // pred_check_branch
      %23 = sbr.rel (0) target = $region9
    $region8: #{tpu_custom_call.1} parent=1 // pred_region
      %25 = vsyncadd [#allocation6], 0
      %s26 = sshll.u32 %s1, 4
      %s27 = int_to_ptr.hbm [resolvable:$true] %s26
      %s28 = sshll.u32 [#allocation5], 4
      %s29 = int_to_ptr.vmem [resolvable:$true] %s28
      %34 = dma.hbm_to_vmem [thread:$0]  %s27, 4096, %s29, [#allocation6], 256, 256, 16
    $region9: #{tpu_custom_call.1} parent=1 // pred_fallthru
      _
    // Predicated region
    $region10: #{tpu_custom_call.1} parent=1 // pred_check
      _
    $region11: #{tpu_custom_call.1} parent=1 // pred_check_branch
      %36 = sbr.rel (0) target = $region13
    $region12: #{tpu_custom_call.1} parent=1 // pred_region
      %38 = vsyncadd [#allocation6], 0
      %s40 = sshll.u32 %s2, 4
      %s41 = int_to_ptr.hbm [resolvable:$true] %s40
      %s42 = sshll.u32 [#allocation7], 4
      %s43 = int_to_ptr.vmem [resolvable:$true] %s42
      %45 = dma.hbm_to_vmem [thread:$0]  %s41, 32, %s43, [#allocation6]
    $region13: #{tpu_custom_call.1} parent=1 // pred_fallthru
      _
    // Predicated region
    $region14: #{tpu_custom_call.1} parent=1 // pred_check
      _
    $region15: #{tpu_custom_call.1} parent=1 // pred_check_branch
      %47 = sbr.rel (0) target = $region17
    $region16: #{tpu_custom_call.1} parent=1 // pred_region
      %49 = dma.done [#allocation3], 64
    $region17: #{tpu_custom_call.1} parent=1 // pred_fallthru
      _
    // Predicated region
    $region18: #{tpu_custom_call.1} parent=1 // pred_check
      _
    $region19: #{tpu_custom_call.1} parent=1 // pred_check_branch
      %51 = sbr.rel (0) target = $region21
    $region20: #{tpu_custom_call.1} parent=1 // pred_region
      %53 = dma.done [#allocation6], 4096
    $region21: #{tpu_custom_call.1} parent=1 // pred_fallthru
      _
    // Predicated region
    $region22: #{tpu_custom_call.1} parent=1 // pred_check
      _
    $region23: #{tpu_custom_call.1} parent=1 // pred_check_branch
      %55 = sbr.rel (0) target = $region25
    $region24: #{tpu_custom_call.1} parent=1 // pred_region
      %57 = dma.done [#allocation6], 32
    $region25: #{tpu_custom_call.1} parent=1 // pred_fallthru
      _
    %v58 = vld [vmem:[#allocation2] sm:$0x7]
    %v59 = vld [vmem:[#allocation5] sm:$0xff]
    %v60 = vld [vmem:[#allocation5 + $0x8] sm:$0xff]
    %v61 = vld [vmem:[#allocation5 + $0x10] sm:$0xff]
    %v62 = vld [vmem:[#allocation5 + $0x18] sm:$0xff]
    %v63 = vld [vmem:[#allocation5 + $0x20] sm:$0xff]
    %v64 = vld [vmem:[#allocation5 + $0x28] sm:$0xff]
    %v65 = vld [vmem:[#allocation5 + $0x30] sm:$0xff]
    %v66 = vld [vmem:[#allocation5 + $0x38] sm:$0xff]
    %v67 = vld [vmem:[#allocation5 + $0x40] sm:$0xff]
    %v68 = vld [vmem:[#allocation5 + $0x48] sm:$0xff]
    %v69 = vld [vmem:[#allocation5 + $0x50] sm:$0xff]
    %v70 = vld [vmem:[#allocation5 + $0x58] sm:$0xff]
    %v71 = vld [vmem:[#allocation5 + $0x60] sm:$0xff]
    %v72 = vld [vmem:[#allocation5 + $0x68] sm:$0xff]
    %v73 = vld [vmem:[#allocation5 + $0x70] sm:$0xff]
    %v74 = vld [vmem:[#allocation5 + $0x78] sm:$0xff]
    %v75 = vld [vmem:[#allocation5 + $0x80] sm:$0xff]
    %v76 = vld [vmem:[#allocation5 + $0x88] sm:$0xff]
    %v77 = vld [vmem:[#allocation5 + $0x90] sm:$0xff]
    %v78 = vld [vmem:[#allocation5 + $0x98] sm:$0xff]
    %v79 = vld [vmem:[#allocation5 + $0xa0] sm:$0xff]
    %v80 = vld [vmem:[#allocation5 + $0xa8] sm:$0xff]
    %v81 = vld [vmem:[#allocation5 + $0xb0] sm:$0xff]
    %v82 = vld [vmem:[#allocation5 + $0xb8] sm:$0xff]
    %v83 = vld [vmem:[#allocation5 + $0xc0] sm:$0xff]
    %v84 = vld [vmem:[#allocation5 + $0xc8] sm:$0xff]
    %v85 = vld [vmem:[#allocation5 + $0xd0] sm:$0xff]
    %v86 = vld [vmem:[#allocation5 + $0xd8] sm:$0xff]
    %v87 = vld [vmem:[#allocation5 + $0xe0] sm:$0xff]
    %v88 = vld [vmem:[#allocation5 + $0xe8] sm:$0xff]
    %v89 = vld [vmem:[#allocation5 + $0xf0] sm:$0xff]
    %v90 = vld [vmem:[#allocation5 + $0xf8] sm:$0xff]
    %v91 = vld [vmem:[#allocation7] sm:$0x3]
    %v93 = vperm.slane %v91, 0
    %v94 = vperm.slane %v91, 1
    %97 = vmatpush.msra.mxu0 %v89
    %98 = vmatpush.msra.mxu0 %v87
    %99 = vmatpush.msra.mxu0 %v85
    %100 = vmatpush.msra.mxu0 %v83
    %101 = vmatpush.msra.mxu0 %v81
    %102 = vmatpush.msra.mxu0 %v79
    %103 = vmatpush.msra.mxu0 %v77
    %104 = vmatpush.msra.mxu0 %v75
    %105 = vmatpush.msra.mxu0 %v73
    %106 = vmatpush.msra.mxu0 %v71
    %107 = vmatpush.msra.mxu0 %v69
    %108 = vmatpush.msra.mxu0 %v67
    %109 = vmatpush.msra.mxu0 %v65
    %110 = vmatpush.msra.mxu0 %v63
    %111 = vmatpush.msra.mxu0 %v61
    %112 = vmatpush.msra.mxu0 %v59
    %113 = vmatmul.f32.gmra.mxu0 %v58
    %v114 = vpop.f32.mrf.mxu0
    %v115 = vadd.f32 %v93, %v114
    %116 = vdwg.mxu0
    %117 = vmatpush.msra.mxu0 %v90
    %118 = vmatpush.msra.mxu0 %v88
    %119 = vmatpush.msra.mxu0 %v86
    %120 = vmatpush.msra.mxu0 %v84
    %121 = vmatpush.msra.mxu0 %v82
    %122 = vmatpush.msra.mxu0 %v80
    %123 = vmatpush.msra.mxu0 %v78
    %124 = vmatpush.msra.mxu0 %v76
    %125 = vmatpush.msra.mxu0 %v74
    %126 = vmatpush.msra.mxu0 %v72
    %127 = vmatpush.msra.mxu0 %v70
    %128 = vmatpush.msra.mxu0 %v68
    %129 = vmatpush.msra.mxu0 %v66
    %130 = vmatpush.msra.mxu0 %v64
    %131 = vmatpush.msra.mxu0 %v62
    %132 = vmatpush.msra.mxu0 %v60
    %133 = vmatmul.f32.gmra.mxu0 %v58
    %v134 = vpop.f32.mrf.mxu0
    %v135 = vadd.f32 %v94, %v134
    %136 = vdwg.mxu0
    %v137 = vmax.f32 %v115, 0.0
    %v138 = vxor.u32 %v135, 2147483648
    %v139 = vmul.f32 %v138, 1.442695
    %v140 = vpow.pop %v139
    %v141 = vadd.f32 %v140, 1.0
    %v142 = vrcp.pop %v141
    %v143 = vmul.f32 %v141, %v142
    %v144 = vsub.f32 1.0, %v143
    %v145 = vmul.f32 %v142, %v144
    %v146 = vadd.f32 %v142, %v145
    %vm147 = vweird.f32 %v141
    %vm148 = vweird.f32 %v142
    %vm149 = vmor %vm147, %vm148
    %v150 = vsel %vm149, %v142, %v146
    %v151 = vand.u32 2147483647, %v141
    %vm152 = vcmp.eq.f32.partialorder %v151, 8.507059e+37
    %v153 = vand.u32 %v141, 2147483648
    %v154 = vor.u32 1.1754944e-38, %v153
    %v155 = vsel %vm152, %v154, %v150
    %v156 = vmul.f32 1.0, %v155
    %v157 = vsub.f32 %v137, %v58
    %v158 = vmul.f32 %v156, %v157
    %v159 = vadd.f32 %v58, %v158
    %160 = vst [vmem:[#allocation8] sm:$0x7] %v159
    // Predicated region
    $region26: #{tpu_custom_call.1} parent=1 // pred_check
      _
    $region27: #{tpu_custom_call.1} parent=1 // pred_check_branch
      %162 = sbr.rel (0) target = $region29
    $region28: #{tpu_custom_call.1} parent=1 // pred_region
      %164 = vsyncadd [#allocation4], 0
      %s166 = sshll.u32 [#allocation8], 4
      %s167 = int_to_ptr.vmem [resolvable:$true] %s166
      %s168 = sshll.u32 %s3, 4
      %s169 = int_to_ptr.hbm [resolvable:$true] %s168
      %171 = dma.vmem_to_hbm [thread:$0]  %s167, 64, %s169, [#allocation4]
    $region29: #{tpu_custom_call.1} parent=1 // pred_fallthru
      _
    // Predicated region
    $region30: #{tpu_custom_call.1} parent=1 // pred_check
      _
    $region31: #{tpu_custom_call.1} parent=1 // pred_check_branch
      %173 = sbr.rel (0) target = $region33
    $region32: #{tpu_custom_call.1} parent=1 // pred_region
      %175 = dma.done [#allocation4], 64
    $region33: #{tpu_custom_call.1} parent=1 // pred_fallthru
      _
    %176 = vsyncpa [#allocation3], 1
    %177 = vsyncpa [#allocation6], 1
    %178 = vsyncpa [#allocation4], 1

</llo_original>
